<compile_context>
chip_gen: v7x
topology: tpu7x:2x2x1
jax: 0.10.0
libtpu: 0.0.40
codegen_flags: <defaults>
</compile_context>

<pallas_src>
import math
import functools

import jax
import jax.numpy as jnp
from jax.experimental import pallas as pl
from jax.experimental.pallas import tpu as pltpu


# ---------------------------------------------------------------------------
# Per-chip budgets & helpers
# ---------------------------------------------------------------------------

def _chip_budgets():
    MiB = 1024 * 1024
    vmem_phys = None
    try:
        info = pltpu.get_tpu_info()
        for name in ("vmem_capacity_bytes", "vmem_size_bytes", "vmem_bytes"):
            v = getattr(info, name, None)
            if isinstance(v, int) and v > 0:
                vmem_phys = v
                break
    except Exception:
        vmem_phys = None
    if vmem_phys is not None and vmem_phys >= 96 * MiB:
        # v5e / v6e: 128 MiB physical VMEM -> big tiles, generous scoped limit.
        return dict(vmem_limit=96 * MiB, gemm_tm=512, gemm_tn=512, gemm_tk=1024,
                    attn_tq=512, attn_tk=256)
    if vmem_phys is not None:
        # v7x: 64 MiB per TensorCore -> conservative.
        return dict(vmem_limit=44 * MiB, gemm_tm=512, gemm_tn=256, gemm_tk=512,
                    attn_tq=512, attn_tk=256)
    # Unknown chip -> safe-everywhere defaults.
    return dict(vmem_limit=32 * MiB, gemm_tm=256, gemm_tn=256, gemm_tk=512,
                attn_tq=256, attn_tk=256)


_BUDGET = _chip_budgets()

# Feature-detect BlockSpec(pipeline_mode=pl.Buffered(k)) for deeper K/V buffering.
try:
    pl.BlockSpec((8, 128), lambda i: (0, 0), pipeline_mode=pl.Buffered(3))
    _HAS_BUFFERED = True
except Exception:
    _HAS_BUFFERED = False


def _pick_tile(dim, target, align):
    """Largest `align`-aligned divisor of `dim` that is <= target, else `dim`."""
    if dim <= target:
        return dim
    t = (min(target, dim) // align) * align
    while t >= align:
        if dim % t == 0:
            return t
        t -= align
    return dim  # fall back to full extent (always legal)


# ---------------------------------------------------------------------------
# Tiled linear (GEMM + optional bias), bf16 MXU inputs, f32 accumulation
# ---------------------------------------------------------------------------

def _linear_kernel(x_ref, w_ref, *rest, has_bias):
    if has_bias:
        b_ref, o_ref, acc_ref = rest
    else:
        o_ref, acc_ref = rest

    @pl.when(pl.program_id(2) == 0)
    def _():
        acc_ref[...] = jnp.zeros_like(acc_ref)

    acc_ref[...] += jnp.dot(x_ref[...], w_ref[...],
                            preferred_element_type=jnp.float32)

    @pl.when(pl.program_id(2) == pl.num_programs(2) - 1)
    def _():
        r = acc_ref[...]
        if has_bias:
            r = r + b_ref[...]
        o_ref[...] = r.astype(o_ref.dtype)


def pallas_linear(x2d, w, b=None, out_dtype=jnp.bfloat16):
    """(M, K) @ (K, N) [+ (N,)] -> (M, N) in out_dtype (default bf16)."""
    M, K = x2d.shape
    N = w.shape[1]
    tm = _pick_tile(M, _BUDGET['gemm_tm'], 16)
    tn = _pick_tile(N, _BUDGET['gemm_tn'], 128)
    tk = _pick_tile(K, _BUDGET['gemm_tk'], 128)
    grid = (M // tm, N // tn, K // tk)

    in_specs = [pl.BlockSpec((tm, tk), lambda i, j, k: (i, k)),
                pl.BlockSpec((tk, tn), lambda i, j, k: (k, j))]
    args = [x2d.astype(jnp.bfloat16), w.astype(jnp.bfloat16)]
    if b is not None:
        in_specs.append(pl.BlockSpec((1, tn), lambda i, j, k: (0, j)))
        args.append(b.reshape(1, N).astype(jnp.float32))

    kern = functools.partial(_linear_kernel, has_bias=b is not None)
    ob = jnp.dtype(out_dtype).itemsize
    cost = pl.CostEstimate(
        flops=2 * M * N * K, transcendentals=0,
        bytes_accessed=(2 * M * K * (N // tn) + 2 * K * N * (M // tm)
                        + ob * M * N + (4 * N if b is not None else 0)))
    return pl.pallas_call(
        kern,
        out_shape=jax.ShapeDtypeStruct((M, N), out_dtype),
        grid_spec=pltpu.PrefetchScalarGridSpec(
            num_scalar_prefetch=0,
            grid=grid,
            in_specs=in_specs,
            out_specs=pl.BlockSpec((tm, tn), lambda i, j, k: (i, j)),
            scratch_shapes=[pltpu.VMEM((tm, tn), jnp.float32)]),
        compiler_params=pltpu.CompilerParams(
            dimension_semantics=("parallel", "parallel", "arbitrary"),
            vmem_limit_bytes=_BUDGET['vmem_limit']),
        cost_estimate=cost,
    )(*args)


# ---------------------------------------------------------------------------
# Fused LayerNorm + linear (ViT QKV projection): LN rides in the GEMM kernel
# ---------------------------------------------------------------------------

def _ln_linear_kernel(x_ref, g_ref, bln_ref, w_ref, b_ref, o_ref, *, eps):
    x = x_ref[...].astype(jnp.float32)                        # (tm, E)
    mu = jnp.mean(x, axis=-1, keepdims=True)
    var = jnp.mean(jnp.square(x - mu), axis=-1, keepdims=True)
    xn = (x - mu) * jax.lax.rsqrt(var + eps)
    xn = xn * g_ref[...] + bln_ref[...]
    r = jnp.dot(xn.astype(jnp.bfloat16), w_ref[...],
                preferred_element_type=jnp.float32) + b_ref[...]
    o_ref[...] = r.astype(o_ref.dtype)


def pallas_layernorm_linear(x2d, gamma, beta, w, b, eps=1e-5,
                            out_dtype=jnp.bfloat16):
    """LayerNorm(x) @ w + b, fused (full-K blocks, no f32 LN round trip)."""
    M, E = x2d.shape
    N = w.shape[1]
    tm = _pick_tile(M, 256, 16)
    tn = _pick_tile(N, _BUDGET['gemm_tn'], 128)
    grid = (M // tm, N // tn)

    kern = functools.partial(_ln_linear_kernel, eps=eps)
    ob = jnp.dtype(out_dtype).itemsize
    cost = pl.CostEstimate(
        flops=2 * M * N * E + 8 * M * E, transcendentals=M,
        bytes_accessed=(2 * M * E * (N // tn) + 2 * E * N * (M // tm)
                        + ob * M * N + 8 * E + 4 * N))
    return pl.pallas_call(
        kern,
        out_shape=jax.ShapeDtypeStruct((M, N), out_dtype),
        grid_spec=pltpu.PrefetchScalarGridSpec(
            num_scalar_prefetch=0,
            grid=grid,
            in_specs=[pl.BlockSpec((tm, E), lambda i, j: (i, 0)),
                      pl.BlockSpec((1, E), lambda i, j: (0, 0)),
                      pl.BlockSpec((1, E), lambda i, j: (0, 0)),
                      pl.BlockSpec((E, tn), lambda i, j: (0, j)),
                      pl.BlockSpec((1, tn), lambda i, j: (0, j))],
            out_specs=pl.BlockSpec((tm, tn), lambda i, j: (i, j))),
        compiler_params=pltpu.CompilerParams(
            dimension_semantics=("parallel", "parallel"),
            vmem_limit_bytes=_BUDGET['vmem_limit']),
        cost_estimate=cost,
    )(x2d.astype(jnp.bfloat16), gamma.reshape(1, E).astype(jnp.float32),
      beta.reshape(1, E).astype(jnp.float32), w.astype(jnp.bfloat16),
      b.reshape(1, N).astype(jnp.float32))


# ---------------------------------------------------------------------------
# Flash-style attention core (online softmax, per-head, K pre-transposed)
# ---------------------------------------------------------------------------

def _flash_attn_kernel(q_ref, k_ref, v_ref, *rest,
                       scale, fill, mask_mode, tq, tk):
    if mask_mode == 'dense':
        mask_ref, o_ref, m_scr, l_scr, acc_scr = rest
    else:
        o_ref, m_scr, l_scr, acc_scr = rest

    qi = pl.program_id(1)
    kt = pl.program_id(2)

    @pl.when(kt == 0)
    def _():
        m_scr[...] = jnp.full_like(m_scr, -1e30)
        l_scr[...] = jnp.zeros_like(l_scr)
        acc_scr[...] = jnp.zeros_like(acc_scr)

    def body():
        # scale folded into the small (tq, dh) q tile, not the (tq, tk) scores
        q = (q_ref[0].astype(jnp.float32) * scale).astype(jnp.bfloat16)
        k = k_ref[0]                                           # (dh, tk), lane-dense
        s = jnp.dot(q, k, preferred_element_type=jnp.float32)  # (tq, tk)

        if mask_mode == 'dense':
            # masked_fill(mask == 0, fill); exp underflow -> exact 0 prob.
            s = jnp.where(mask_ref[...] == 0, fill, s)
        elif mask_mode == 'causal':
            row = qi * tq + jax.lax.broadcasted_iota(jnp.int32, (tq, tk), 0)
            col = kt * tk + jax.lax.broadcasted_iota(jnp.int32, (tq, tk), 1)
            s = jnp.where(row >= col, s, fill)

        m_prev = m_scr[...]                                    # (tq, 1)
        m_new = jnp.maximum(m_prev, jnp.max(s, axis=-1, keepdims=True))
        alpha = jnp.exp(m_prev - m_new)
        p = jnp.exp(s - m_new)                                 # (tq, tk) f32
        l_scr[...] = alpha * l_scr[...] + jnp.sum(p, axis=-1, keepdims=True)
        acc_scr[...] = alpha * acc_scr[...] + jnp.dot(
            p.astype(v_ref.dtype), v_ref[0], preferred_element_type=jnp.float32)
        m_scr[...] = m_new

    if mask_mode == 'causal':
        # Skip kv blocks that lie entirely above the diagonal (fully masked).
        # Block 0 is never skipped, so every row keeps a finite max / l > 0.
        pl.when(kt * tk <= (qi + 1) * tq - 1)(body)
    else:
        body()

    @pl.when(kt == pl.num_programs(2) - 1)
    def _():
        inv = pl.reciprocal(l_scr[...], approx=True)
        o_ref[0] = (acc_scr[...] * inv).astype(o_ref.dtype)


def pallas_mha_core(q, kT, v, *, scale, mask=None, causal=False, fill=-1e30,
                    out_dtype=jnp.bfloat16):
    """q, v: (B*H, T, dh); kT: (B*H, dh, T) (pre-transposed); -> (B*H, T, dh).

    mask (optional): (T, T) keep(1)/mask(0); causal=True builds the causal
    mask in-kernel (no T*T mask DMA) and skips fully-masked kv blocks.
    """
    BH, T, dh = q.shape
    tq = _pick_tile(T, _BUDGET['attn_tq'], 16)
    tk = _pick_tile(T, _BUDGET['attn_tk'], 128)
    grid = (BH, T // tq, T // tk)
    mask_mode = 'dense' if mask is not None else ('causal' if causal else 'none')

    def kv_spec(shape, imap):
        if _HAS_BUFFERED:
            return pl.BlockSpec(shape, imap, pipeline_mode=pl.Buffered(3))
        return pl.BlockSpec(shape, imap)

    in_specs = [pl.BlockSpec((1, tq, dh), lambda b, qi, ki: (b, qi, 0)),
                kv_spec((1, dh, tk), lambda b, qi, ki: (b, 0, ki)),
                kv_spec((1, tk, dh), lambda b, qi, ki: (b, ki, 0))]
    args = [q.astype(jnp.bfloat16), kT.astype(jnp.bfloat16),
            v.astype(jnp.bfloat16)]
    if mask_mode == 'dense':
        in_specs.append(pl.BlockSpec((tq, tk), lambda b, qi, ki: (qi, ki)))
        args.append(mask.astype(jnp.bfloat16))   # bf16 mask: half the DMA bytes

    kern = functools.partial(_flash_attn_kernel, scale=scale, fill=fill,
                             mask_mode=mask_mode, tq=tq, tk=tk)
    cost = pl.CostEstimate(
        flops=4 * BH * T * T * dh,
        transcendentals=BH * T * T,
        bytes_accessed=2 * BH * T * dh * (2 + 2 * (T // tq))
                       + (2 * BH * T * T if mask_mode == 'dense' else 0))
    return pl.pallas_call(
        kern,
        out_shape=jax.ShapeDtypeStruct((BH, T, dh), out_dtype),
        grid_spec=pltpu.PrefetchScalarGridSpec(
            num_scalar_prefetch=0,
            grid=grid,
            in_specs=in_specs,
            out_specs=pl.BlockSpec((1, tq, dh), lambda b, qi, ki: (b, qi, 0)),
            scratch_shapes=[pltpu.VMEM((tq, 1), jnp.float32),
                            pltpu.VMEM((tq, 1), jnp.float32),
                            pltpu.VMEM((tq, dh), jnp.float32)]),
        compiler_params=pltpu.CompilerParams(
            dimension_semantics=("parallel", "parallel", "arbitrary"),
            vmem_limit_bytes=_BUDGET['vmem_limit']),
        cost_estimate=cost,
    )(*args)


# ---------------------------------------------------------------------------
# Pure-JAX references (verification only)
# ---------------------------------------------------------------------------

def _ref_linear(x2d, w, b=None, out_dtype=jnp.float32):
    out = x2d.astype(jnp.float32) @ w.astype(jnp.float32)
    return out if b is None else out + b.astype(jnp.float32)[None]


def _ref_layernorm_linear(x2d, g, b_ln, w, b, eps=1e-5, out_dtype=jnp.float32):
    x = x2d.astype(jnp.float32)
    mu = jnp.mean(x, axis=-1, keepdims=True)
    var = jnp.mean((x - mu) ** 2, axis=-1, keepdims=True)
    xn = (x - mu) / jnp.sqrt(var + eps) * g.astype(jnp.float32)[None] \
        + b_ln.astype(jnp.float32)[None]
    return _ref_linear(xn, w, b)


def _ref_mha_core(q, kT, v, *, scale, mask=None, causal=False, fill=-1e30,
                  out_dtype=jnp.float32):
    q = q.astype(jnp.float32); k = kT.astype(jnp.float32); v = v.astype(jnp.float32)
    s = jnp.einsum('bqd,bdk->bqk', q, k) * scale
    T = q.shape[1]
    if causal:
        tri = jnp.tril(jnp.ones((T, T), jnp.float32))
        s = jnp.where(tri[None] == 0.0, -jnp.inf, s)
    elif mask is not None:
        s = jnp.where(mask[None].astype(jnp.float32) == 0.0, fill, s)
    p = jax.nn.softmax(s, axis=-1)
    return jnp.einsum('bqk,bkd->bqd', p, v)


# ---------------------------------------------------------------------------
# Head split/merge glue (XLA-level; see TODO at top)
# ---------------------------------------------------------------------------

def _split_qkv(qkv, B, T, H, dh):
    """(B*T, 3*H*dh) -> q (BH,T,dh), kT (BH,dh,T), v (BH,T,dh)."""
    qkv5 = qkv.reshape(B, T, 3, H, dh)
    q = qkv5[:, :, 0].transpose(0, 2, 1, 3).reshape(B * H, T, dh)
    kT = qkv5[:, :, 1].transpose(0, 2, 3, 1).reshape(B * H, dh, T)   # lane-dense K
    v = qkv5[:, :, 2].transpose(0, 2, 1, 3).reshape(B * H, T, dh)
    return q, kT, v


def _merge_heads(t, B, T, H, dh):
    return t.reshape(B, H, T, dh).transpose(0, 2, 1, 3).reshape(B * T, H * dh)


# ---------------------------------------------------------------------------
# Attention module (GPT / BERT / ViT modes)
# ---------------------------------------------------------------------------

class Attention:
    """JAX/Pallas port of the PyTorch `Attention` wrapper."""

    def __init__(self, mode, key, **kwargs):
        self.mode = mode.lower()
        if self.mode not in ('bert', 'gpt', 'vit'):
            raise ValueError("Mode must be 'GPT', 'BERT' or 'ViT'")

        def init(k, shape):  # weights stored in bf16 (bf16 end-to-end path)
            return (0.02 * jax.random.normal(k, shape)).astype(jnp.bfloat16)

        if self.mode == 'gpt':
            H = kwargs.get('num_heads'); hs = kwargs.get('head_size')
            C = kwargs.get('num_embed'); bs = kwargs.get('block_size')
            self.cfg = dict(H=H, hs=hs, C=C, block_size=bs)
            ks = jax.random.split(key, 3)
            self.w_qkv = init(ks[0], (C, 3 * H * hs))   # fused no-bias q|k|v
            self.w_proj = init(ks[1], (C, C))
            self.b_proj = init(ks[2], (C,))
        elif self.mode == 'bert':
            H = kwargs.get('n_heads'); E = kwargs.get('out_dim')
            self.cfg = dict(H=H, E=E)
            ks = jax.random.split(key, 4)
            self.w_in = init(ks[0], (E, 3 * E))
            self.b_in = init(ks[1], (3 * E,))
            self.w_out = init(ks[2], (E, E))
            self.b_out = init(ks[3], (E,))
        else:  # vit
            E = kwargs.get('embedding_dim', 768)
            H = kwargs.get('num_heads', 12)
            self.cfg = dict(H=H, E=E)
            ks = jax.random.split(key, 4)
            self.ln_g = jnp.ones((E,), jnp.float32)
            self.ln_b = jnp.zeros((E,), jnp.float32)
            self.w_in = init(ks[0], (E, 3 * E))
            self.b_in = init(ks[1], (3 * E,))
            self.w_out = init(ks[2], (E, E))
            self.b_out = init(ks[3], (E,))

    # ---- forwards -------------------------------------------------------

    def __call__(self, x, y=None, mask=None):
        if self.mode == 'gpt':
            return self._gpt(x)
        elif self.mode == 'bert':
            return self._bert(x, y, mask)
        else:
            return self._vit(x)

    def _gpt(self, x, linear=pallas_linear, mha=pallas_mha_core):
        H, hs, C = self.cfg['H'], self.cfg['hs'], self.cfg['C']
        B, T, _ = x.shape
        qkv = linear(x.reshape(B * T, C), self.w_qkv, None)        # fused, no bias
        q, kT, v = _split_qkv(qkv, B, T, H, hs)
        # reference scales by C**-0.5 (num_embed), not head_size; causal mask
        # generated in-kernel; fully-masked kv blocks skipped.
        o = mha(q, kT, v, scale=C ** (-0.5), causal=True)
        o = _merge_heads(o, B, T, H, hs)                # == concat over heads
        out = linear(o, self.w_proj, self.b_proj, out_dtype=jnp.float32)
        return out.reshape(B, T, C)

    def _bert(self, x, y=None, mask=None,
              linear=pallas_linear, mha=pallas_mha_core):
        # NOTE: matches reference semantics — `y` accepted but QKV come from `x`.
        H, E = self.cfg['H'], self.cfg['E']
        B, T, _ = x.shape
        dh = E // H
        qkv = linear(x.reshape(B * T, E), self.w_in, self.b_in)
        q, kT, v = _split_qkv(qkv, B, T, H, dh)
        # reference: masked_fill(mask == 0, -1000.0)
        o = mha(q, kT, v, scale=1.0 / math.sqrt(dh), mask=mask, fill=-1000.0)
        o = _merge_heads(o, B, T, H, dh)
        out = linear(o, self.w_out, self.b_out, out_dtype=jnp.float32)
        return out.reshape(B, T, E)

    def _vit(self, x, linear=pallas_linear, ln_linear=pallas_layernorm_linear,
             mha=pallas_mha_core):
        H, E = self.cfg['H'], self.cfg['E']
        B, T, _ = x.shape
        dh = E // H
        qkv = ln_linear(x.reshape(B * T, E), self.ln_g, self.ln_b,
                        self.w_in, self.b_in)                  # fused LN + QKV
        q, kT, v = _split_qkv(qkv, B, T, H, dh)
        o = mha(q, kT, v, scale=1.0 / math.sqrt(dh))           # no mask in ViT
        o = _merge_heads(o, B, T, H, dh)
        out = linear(o, self.w_out, self.b_out, out_dtype=jnp.float32)
        return out.reshape(B, T, E)


# ---------------------------------------------------------------------------

if __name__ == "__main__":
    key = jax.random.PRNGKey(0)
    k_gpt, k_bert, k_vit, kx1, kx2, kx3 = jax.random.split(key, 6)

    # --- GPT mode (causal, in-kernel mask, block skipping) ---
    gpt = Attention('GPT', k_gpt, num_heads=2, head_size=8, num_embed=16,
                    block_size=8, dropout=0.0)
    x_gpt = jax.random.normal(kx1, (2, 8, 16), jnp.float32)
    out_gpt = jax.block_until_ready(gpt(x_gpt))
    ref_gpt = gpt._gpt(x_gpt, linear=_ref_linear, mha=_ref_mha_core)
    assert out_gpt.shape == (2, 8, 16)
    assert jnp.allclose(out_gpt, ref_gpt, atol=2e-2, rtol=2e-2)

    # --- BERT mode, no mask ---
    bert = Attention('BERT', k_bert, n_heads=2, out_dim=16, dropout=0.0)
    x_bert = jax.random.normal(kx2, (2, 8, 16), jnp.float32)
    out_bert = jax.block_until_ready(bert(x_bert))
    ref_bert = bert._bert(x_bert, linear=_ref_linear, mha=_ref_mha_core)
    assert out_bert.shape == (2, 8, 16)
    assert jnp.allclose(out_bert, ref_bert, atol=2e-2, rtol=2e-2)

    # --- BERT mode, with a user-supplied (T, T) mask (dense-mask path) ---
    user_mask = jnp.tril(jnp.ones((8, 8), jnp.float32))
    out_bert_m = jax.block_until_ready(bert(x_bert, None, user_mask))
    ref_bert_m = bert._bert(x_bert, None, user_mask,
                            linear=_ref_linear, mha=_ref_mha_core)
    assert jnp.allclose(out_bert_m, ref_bert_m, atol=2e-2, rtol=2e-2)

    # --- ViT mode (fused LN + QKV) ---
    vit = Attention('ViT', k_vit, embedding_dim=32, num_heads=4, attn_dropout=0.0)
    x_vit = jax.random.normal(kx3, (2, 8, 32), jnp.float32)
    out_vit = jax.block_until_ready(vit(x_vit))
    ref_vit = vit._vit(x_vit, linear=_ref_linear,
                       ln_linear=_ref_layernorm_linear, mha=_ref_mha_core)
    assert out_vit.shape == (2, 8, 32)
    assert jnp.allclose(out_vit, ref_vit, atol=2e-2, rtol=2e-2)

    print("KERNEL_OK")
</pallas_src>

<mosaic_0001>
module attributes {stable_mosaic.version = 11 : i64} {
  func.func @_linear_kernel(%arg0: i32, %arg1: i32, %arg2: i32, %arg3: memref<16x16xbf16, #tpu.memory_space<vmem>>, %arg4: memref<16x48xbf16, #tpu.memory_space<vmem>>, %arg5: memref<16x48xbf16, #tpu.memory_space<vmem>>, %arg6: memref<16x48xf32, #tpu.memory_space<vmem>>) attributes {dimension_semantics = [#tpu.dimension_semantics<parallel>, #tpu.dimension_semantics<parallel>, #tpu.dimension_semantics<arbitrary>], iteration_bounds = array<i64: 1, 1, 1>, scalar_prefetch = 0 : i64, scratch_operands = 1 : i64, tpu.core_type = #tpu.core_type<tc>, window_params = [{transform_indices = @transform_0, window_bounds = array<i64: 16, 16>}, {transform_indices = @transform_1, window_bounds = array<i64: 16, 48>}, {transform_indices = @transform_2, window_bounds = array<i64: 16, 48>}]} {
    %c0_i32 = arith.constant 0 : i32
    %0 = arith.cmpi eq, %arg2, %c0_i32 : i32
    %1 = arith.extui %0 : i1 to i32
    %c0_i32_0 = arith.constant 0 : i32
    %2 = arith.cmpi ne, %1, %c0_i32_0 : i32
    scf.if %2 {
      %cst_10 = arith.constant 0.000000e+00 : f32
      %12 = vector.broadcast %cst_10 : f32 to vector<16x48xf32>
      %c0_11 = arith.constant 0 : index
      %c0_12 = arith.constant 0 : index
      %13 = vector.load %arg6[%c0_11, %c0_12] : memref<16x48xf32, #tpu.memory_space<vmem>>, vector<16x48xf32>
      tpu.vector_store %arg6[%c0_11, %c0_12], %12 {strides = array<i32>} : memref<16x48xf32, #tpu.memory_space<vmem>>, vector<16x48xf32>,
    } else {
    }
    %c0 = arith.constant 0 : index
    %c0_1 = arith.constant 0 : index
    %3 = vector.load %arg6[%c0, %c0_1] : memref<16x48xf32, #tpu.memory_space<vmem>>, vector<16x48xf32>
    %c0_2 = arith.constant 0 : index
    %c0_3 = arith.constant 0 : index
    %4 = vector.load %arg3[%c0_2, %c0_3] : memref<16x16xbf16, #tpu.memory_space<vmem>>, vector<16x16xbf16>
    %c0_4 = arith.constant 0 : index
    %c0_5 = arith.constant 0 : index
    %5 = vector.load %arg4[%c0_4, %c0_5] : memref<16x48xbf16, #tpu.memory_space<vmem>>, vector<16x48xbf16>
    %cst = arith.constant dense<0.000000e+00> : vector<16x48xf32>
    %6 = tpu.matmul %4, %5, %cst {dimension_numbers = #tpu.dot_dimension_numbers<[1], [0], [0], [1], [0, 0, 1, 1], [], []>} : vector<16x16xbf16>, vector<16x48xbf16>, vector<16x48xf32> -> vector<16x48xf32>
    %7 = arith.addf %3, %6 : vector<16x48xf32>
    %c0_6 = arith.constant 0 : index
    %c0_7 = arith.constant 0 : index
    %8 = vector.load %arg6[%c0_6, %c0_7] : memref<16x48xf32, #tpu.memory_space<vmem>>, vector<16x48xf32>
    tpu.vector_store %arg6[%c0_6, %c0_7], %7 {strides = array<i32>} : memref<16x48xf32, #tpu.memory_space<vmem>>, vector<16x48xf32>,
    %c0_i32_8 = arith.constant 0 : i32
    %9 = arith.cmpi eq, %arg2, %c0_i32_8 : i32
    %10 = arith.extui %9 : i1 to i32
    %c0_i32_9 = arith.constant 0 : i32
    %11 = arith.cmpi ne, %10, %c0_i32_9 : i32
    scf.if %11 {
      %c0_10 = arith.constant 0 : index
      %c0_11 = arith.constant 0 : index
      %12 = vector.load %arg6[%c0_10, %c0_11] : memref<16x48xf32, #tpu.memory_space<vmem>>, vector<16x48xf32>
      %13 = arith.truncf %12 : vector<16x48xf32> to vector<16x48xbf16>
      %c0_12 = arith.constant 0 : index
      %c0_13 = arith.constant 0 : index
      %14 = vector.load %arg5[%c0_12, %c0_13] : memref<16x48xbf16, #tpu.memory_space<vmem>>, vector<16x48xbf16>
      tpu.vector_store %arg5[%c0_12, %c0_13], %13 {strides = array<i32>} : memref<16x48xbf16, #tpu.memory_space<vmem>>, vector<16x48xbf16>,
    } else {
    }
    return
  }
  func.func @transform_0(%arg0: i32, %arg1: i32, %arg2: i32) -> (i32, i32) {
    %c0_i32 = arith.constant 0 : i32
    return %arg0, %arg2 : i32, i32
  }
  func.func @transform_1(%arg0: i32, %arg1: i32, %arg2: i32) -> (i32, i32) {
    %c0_i32 = arith.constant 0 : i32
    return %arg2, %arg1 : i32, i32
  }
  func.func @transform_2(%arg0: i32, %arg1: i32, %arg2: i32) -> (i32, i32) {
    %c0_i32 = arith.constant 0 : i32
    return %arg0, %arg1 : i32, i32
  }
}

</mosaic_0001>

<llo_original>
// kernel: tpu_custom_call.1
$region0: #{tpu_custom_call.1}
  #allocation0 [shape = 'u32[]', space=smem, size = 0x4, offset = 0x4, fixed_abs, tag = 'smem constant byte address 0x4 - core index']
  #allocation1 [shape = 'u32[144,128]{1,0:T(1,128)}', space=vmem, size = 0x12000, scoped, tag = 'internal scratch']
  #allocation2 [shape = 'f32[16,48]{1,0:T(8,128)}', space=vmem, size = 0x2000, scoped, tag = 'scratch operand']
  %s0 = inlined_call_operand.hbm [shape: bf16[16,16], index: 0, kind: input, shape index: {}]
  %s1 = inlined_call_operand.hbm [shape: bf16[16,48], index: 1, kind: input, shape index: {}]
  %s2 = inlined_call_operand.hbm [shape: bf16[16,48], index: 2, kind: output, shape index: {}]
  %s3 = sld [smem:[#allocation0]]
  $region34: #{tpu_custom_call.1} parent=0
    _
  %s5 = ssub.s32 1, %s3
  %s6 = scalar_select 0, %s5, %s3
  $region1: #{tpu_custom_call.1} parent=0
    #allocation3 [shape = 'u8[4096]{0}', space=vmem, size = 0x1000, scoped, tag = 'input window, operand 0, single buffered']
    #allocation4 [shape = 's32[1]{0}', space=sflag, size = 0x4, scoped, tag = 'scoped memory for tpu_custom_call.1']
    #allocation5 [shape = 's32[1]{0}', space=sflag, size = 0x4, scoped, tag = 'scoped memory for tpu_custom_call.1']
    #allocation6 [shape = 'u8[4096]{0}', space=vmem, size = 0x1000, scoped, tag = 'input window, operand 1, single buffered']
    #allocation7 [shape = 's32[1]{0}', space=sflag, size = 0x4, scoped, tag = 'scoped memory for tpu_custom_call.1']
    #allocation8 [shape = 'u8[4096]{0}', space=vmem, size = 0x1000, scoped, tag = 'output window, operand 0, single buffered']
    %7 = vsyncpa [#allocation4], 0
    %8 = vsyncpa [#allocation7], 0
    %9 = vsyncpa [#allocation5], 0
    // Predicated region
    $region2: #{tpu_custom_call.1} parent=1 // pred_check
      _
    $region3: #{tpu_custom_call.1} parent=1 // pred_check_branch
      %11 = sbr.rel (0) target = $region5
    $region4: #{tpu_custom_call.1} parent=1 // pred_region
      %s13 = ssub.s32 128, 128
      %14 = vsyncadd [#allocation4], %s13
      %s15 = sshll.u32 [#allocation3], 4
      %s16 = int_to_ptr.vmem [resolvable:$true] %s15
      %21 = dma.hbm_to_vmem [thread:$0]  %s0, 128, %s16, [#allocation4], 64, 64, 4
    $region5: #{tpu_custom_call.1} parent=1 // pred_fallthru
      _
    // Predicated region
    $region6: #{tpu_custom_call.1} parent=1 // pred_check
      _
    $region7: #{tpu_custom_call.1} parent=1 // pred_check_branch
      %23 = sbr.rel (0) target = $region9
    $region8: #{tpu_custom_call.1} parent=1 // pred_region
      %s25 = ssub.s32 128, 128
      %26 = vsyncadd [#allocation7], %s25
      %s27 = sshll.u32 [#allocation6], 4
      %s28 = int_to_ptr.vmem [resolvable:$true] %s27
      %33 = dma.hbm_to_vmem [thread:$0]  %s1, 128, %s28, [#allocation7], 64, 64, 4
    $region9: #{tpu_custom_call.1} parent=1 // pred_fallthru
      _
    // Predicated region
    $region10: #{tpu_custom_call.1} parent=1 // pred_check
      _
    $region11: #{tpu_custom_call.1} parent=1 // pred_check_branch
      %35 = sbr.rel (0) target = $region13
    $region12: #{tpu_custom_call.1} parent=1 // pred_region
      %36 = dma.done [#allocation4], 128
    $region13: #{tpu_custom_call.1} parent=1 // pred_fallthru
      _
    // Predicated region
    $region14: #{tpu_custom_call.1} parent=1 // pred_check
      _
    $region15: #{tpu_custom_call.1} parent=1 // pred_check_branch
      %38 = sbr.rel (0) target = $region17
    $region16: #{tpu_custom_call.1} parent=1 // pred_region
      %39 = dma.done [#allocation7], 128
    $region17: #{tpu_custom_call.1} parent=1 // pred_fallthru
      _
    %p41 = scmp.eq.s32.totalorder 0, 0
    // Predicated region
    $region18: #{tpu_custom_call.1} parent=1 // pred_check
      %p42 = pneg %p41
    $region19: #{tpu_custom_call.1} parent=1 // pred_check_branch
      %44 = sbr.rel (%p42) target = $region21
    $region20: #{tpu_custom_call.1} parent=1 // pred_region
      %vm45 = vcmask 392192
      %46 = vst.msk [vmem:[#allocation2] sm:$0xff] %vm45, 0.0
      %47 = vst.msk [vmem:[#allocation2 + $0x8] sm:$0xff] %vm45, 0.0
    $region21: #{tpu_custom_call.1} parent=1 // pred_fallthru
      _
    %v48 = vld [vmem:[#allocation2] sm:$0xff]
    %v49 = vld [vmem:[#allocation2 + $0x8] sm:$0xff]
    %v50 = vld [vmem:[#allocation3] sm:$0xf]
    %v51 = vld [vmem:[#allocation3 + $0x4] sm:$0xf]
    %v52 = vld [vmem:[#allocation6] sm:$0xf]
    %v53 = vld [vmem:[#allocation6 + $0x4] sm:$0xf]
    %v56 = vunpack.c.l.b16 %v50
    %v57 = vunpack.c.l.b16 %v51
    %v58 = vpack.c.b16 %v57, %v56
    %v61 = vunpack.c.l.b16 %v52
    %v62 = vunpack.c.l.b16 %v53
    %v63 = vpack.c.b16 %v62, %v61
    %vm65 = vcmask 130048
    %v67 = vsel %vm65, %v58, 0
    %69 = vmatprep.subr.bf16.mxu0 0
    %70 = vmatpush1.bf16.msra.mxu0 %v63
    %71 = vmatprep.subr.bf16.mxu0 0
    %72 = vmatpush1.bf16.msra.mxu0 0
    %73 = vmatprep.subr.bf16.mxu0 0
    %74 = vmatpush1.bf16.msra.mxu0 0
    %75 = vmatprep.subr.bf16.mxu0 0
    %76 = vmatpush1.bf16.msra.mxu0 0
    %77 = vmatprep.subr.bf16.mxu0 0
    %78 = vmatpush1.bf16.msra.mxu0 0
    %79 = vmatprep.subr.bf16.mxu0 0
    %80 = vmatpush1.bf16.msra.mxu0 0
    %81 = vmatprep.subr.bf16.mxu0 0
    %82 = vmatpush1.bf16.msra.mxu0 0
    %83 = vmatprep.subr.bf16.mxu0 0
    %84 = vmatpush1.bf16.msra.mxu0 0
    %85 = vmatprep.subr.bf16.mxu0 0
    %86 = vmatpush1.bf16.msra.mxu0 0
    %87 = vmatprep.subr.bf16.mxu0 0
    %88 = vmatpush1.bf16.msra.mxu0 0
    %89 = vmatprep.subr.bf16.mxu0 0
    %90 = vmatpush1.bf16.msra.mxu0 0
    %91 = vmatprep.subr.bf16.mxu0 0
    %92 = vmatpush1.bf16.msra.mxu0 0
    %93 = vmatprep.subr.bf16.mxu0 0
    %94 = vmatpush1.bf16.msra.mxu0 0
    %95 = vmatprep.subr.bf16.mxu0 0
    %96 = vmatpush1.bf16.msra.mxu0 0
    %97 = vmatprep.subr.bf16.mxu0 0
    %98 = vmatpush1.bf16.msra.mxu0 0
    %99 = vmatprep.subr.bf16.mxu0 0
    %100 = vmatpush1.bf16.msra.mxu0 0
    %101 = vmatprep.mubr.bf16.mxu0 0
    %102 = vmatmul.mubr.bf16.gmra.mrb[0].mxu0 %v67
    %v103 = vpop.f32.mrb[0].mxu0
    %v104 = vadd.f32 0.0, %v103
    %v105 = vpop.f32.mrb[0].mxu0
    %v106 = vpop.f32.mrb[0].mxu0
    %v107 = vadd.f32 0.0, %v106
    %v108 = vpop.f32.mrb[0].mxu0
    %109 = vdwg.mxu0
    %v110 = vadd.f32 %v48, %v104
    %v111 = vadd.f32 %v49, %v107
    %vm112 = vcmask 392192
    %113 = vst.msk [vmem:[#allocation2] sm:$0xff] %vm112, %v110
    %114 = vst.msk [vmem:[#allocation2 + $0x8] sm:$0xff] %vm112, %v111
    // Predicated region
    $region22: #{tpu_custom_call.1} parent=1 // pred_check
      %p115 = pneg %p41
    $region23: #{tpu_custom_call.1} parent=1 // pred_check_branch
      %117 = sbr.rel (%p115) target = $region25
    $region24: #{tpu_custom_call.1} parent=1 // pred_region
      %v118 = vld [vmem:[#allocation2] sm:$0xff]
      %v119 = vld [vmem:[#allocation2 + $0x8] sm:$0xff]
      %v120 = vpack.c.bf16 %v119, %v118
      %v122 = vunpack.c.l.b16 %v120
      %v123 = vunpack.c.h.b16 %v120
      %v124 = vpack.c.b16 %v122, %v122
      %v125 = vpack.c.b16 %v123, %v123
      %vm128 = vcmask 388096
      %129 = vst.msk [vmem:[#allocation8] sm:$0xf] %vm128, %v124
      %130 = vst.msk [vmem:[#allocation8 + $0x4] sm:$0xf] %vm128, %v125
    $region25: #{tpu_custom_call.1} parent=1 // pred_fallthru
      _
    // Predicated region
    $region26: #{tpu_custom_call.1} parent=1 // pred_check
      _
    $region27: #{tpu_custom_call.1} parent=1 // pred_check_branch
      %132 = sbr.rel (0) target = $region29
    $region28: #{tpu_custom_call.1} parent=1 // pred_region
      %s134 = ssub.s32 128, 128
      %135 = vsyncadd [#allocation5], %s134
      %s136 = sshll.u32 [#allocation8], 4
      %s137 = int_to_ptr.vmem [resolvable:$true] %s136
      %142 = dma.vmem_to_hbm [thread:$0]  %s137, 128, %s2, [#allocation5], 64, 64, 4
    $region29: #{tpu_custom_call.1} parent=1 // pred_fallthru
      _
    // Predicated region
    $region30: #{tpu_custom_call.1} parent=1 // pred_check
      _
    $region31: #{tpu_custom_call.1} parent=1 // pred_check_branch
      %144 = sbr.rel (0) target = $region33
    $region32: #{tpu_custom_call.1} parent=1 // pred_region
      %145 = dma.done [#allocation5], 128
    $region33: #{tpu_custom_call.1} parent=1 // pred_fallthru
      _
    %146 = vsyncpa [#allocation4], 1
    %147 = vsyncpa [#allocation7], 1
    %148 = vsyncpa [#allocation5], 1

</llo_original>
